<compile_context>
chip_gen: v6e
topology: v6e:2x2x1
jax: 0.10.0
libtpu: 0.0.40
codegen_flags: <defaults>
</compile_context>

<pallas_src>
import functools

import jax
import jax.numpy as jnp
from jax.experimental import pallas as pl
from jax.experimental.pallas import tpu as pltpu

LANE = 128  # hidden (64) and class (38) dims are zero-padded to 128 lanes


def _round_up(n, m):
    return ((n + m - 1) // m) * m


def _cdiv(a, b):
    return -(-a // b)


def _choose_tile(B, tile_b):
    """Batch tile: multiple of 16 (bf16 sublanes); >=2 grid steps when possible."""
    tb = min(_round_up(tile_b, 16), _round_up(B, 16))
    if tb > 16 and _cdiv(B, tb) < 2:
        # Keep at least 2 grid steps so the "parallel" batch axis can shard
        # across the 2 TensorCores on v7x.
        tb = _round_up(_cdiv(B, 2), 16)
    return max(tb, 16)


# ---------------------------------------------------------------------------
# Kernel: whole network fused; one grid step processes one batch tile.
# ---------------------------------------------------------------------------
def _net3_kernel(x_ref, w1_ref, w_ref, t_ref, out_ref):
    x = x_ref[...].astype(jnp.bfloat16)     # (TB, in_dim) f32 -> bf16 in VMEM
    t = t_ref[...]                          # (4, 128) f32 folded shifts

    # fc1 + bn1 (folded) + relu          (dropout == identity in eval mode)
    h = jnp.dot(x, w1_ref[...], preferred_element_type=jnp.float32) + t[0:1, :]
    h = jnp.maximum(h, 0.0)

    # fc2 + bn2 + relu
    h = jnp.dot(h.astype(jnp.bfloat16), w_ref[0],
                preferred_element_type=jnp.float32) + t[1:2, :]
    h = jnp.maximum(h, 0.0)

    # fc3 + bn3 + relu
    h = jnp.dot(h.astype(jnp.bfloat16), w_ref[1],
                preferred_element_type=jnp.float32) + t[2:3, :]
    h = jnp.maximum(h, 0.0)

    # fc4 (logits); padded class lanes stay exactly 0 (zero W cols, zero shift)
    out = jnp.dot(h.astype(jnp.bfloat16), w_ref[2],
                  preferred_element_type=jnp.float32) + t[3:4, :]
    out_ref[...] = out.astype(out_ref.dtype)   # lane-dense bf16 store


# ---------------------------------------------------------------------------
# Wrapper
# ---------------------------------------------------------------------------
@functools.partial(jax.jit, static_argnames=("num_classes", "tile_b"))
def _net3_forward(x, w1, w234, t, *, num_classes, tile_b):
    B, in_dim = x.shape
    tb = _choose_tile(B, tile_b)
    Bp = _round_up(B, tb)
    if Bp != B:
        # Batch-only zero pad (no width pad, no dtype change); tiny or elided.
        x = jnp.pad(x, ((0, Bp - B), (0, 0)))

    grid = (Bp // tb,)

    flops = 2 * Bp * (in_dim * LANE + 3 * LANE * LANE)
    bytes_accessed = (Bp * in_dim * 4            # x read (f32, native width)
                      + w1.size * 2 + w234.size * 2
                      + t.size * 4
                      + Bp * LANE * 2)           # logits write (bf16)
    cost = pl.CostEstimate(flops=flops, transcendentals=0,
                           bytes_accessed=bytes_accessed)

    out = pl.pallas_call(
        _net3_kernel,
        out_shape=jax.ShapeDtypeStruct((Bp, LANE), jnp.bfloat16),
        grid=grid,
        in_specs=[
            pl.BlockSpec((tb, in_dim), lambda i: (i, 0)),        # x (batch-tiled)
            pl.BlockSpec((in_dim, LANE), lambda i: (0, 0)),      # w1 (resident)
            pl.BlockSpec((3, LANE, LANE), lambda i: (0, 0, 0)),  # w2..w4 stacked
            pl.BlockSpec((4, LANE), lambda i: (0, 0)),           # packed shifts
        ],
        out_specs=pl.BlockSpec((tb, LANE), lambda i: (i, 0)),
        compiler_params=pltpu.CompilerParams(
            dimension_semantics=("parallel",)),
        cost_estimate=cost,
    )(x, w1, w234, t)

    return out[:B, :num_classes]


def net3_forward(x, prepped, *, tile_b=1024):
    """x: (B, input_dim) float32; prepped: output of prepare_params()."""
    return _net3_forward(x, prepped["w1"], prepped["w234"], prepped["t"],
                         num_classes=prepped["num_classes"], tile_b=tile_b)


# ---------------------------------------------------------------------------
# Parameters
# ---------------------------------------------------------------------------
def init_raw_params(key, input_dim, hidden_dim=64, num_classes=38):
    """Synthetic parameters matching Net3's shapes (Linear weights as (in, out))."""
    dims = [(input_dim, hidden_dim), (hidden_dim, hidden_dim),
            (hidden_dim, hidden_dim), (hidden_dim, num_classes)]
    keys = jax.random.split(key, 2 * 4 + 4 * 3)
    ki = 0
    raw = {"input_dim": input_dim, "hidden_dim": hidden_dim,
           "num_classes": num_classes}
    for i, (fan_in, fan_out) in enumerate(dims, start=1):
        bound = 1.0 / (fan_in ** 0.5)
        raw[f"w{i}"] = jax.random.uniform(keys[ki], (fan_in, fan_out),
                                          jnp.float32, -bound, bound); ki += 1
        raw[f"b{i}"] = jax.random.uniform(keys[ki], (fan_out,),
                                          jnp.float32, -bound, bound); ki += 1
    for i in (1, 2, 3):
        raw[f"gamma{i}"] = 1.0 + 0.1 * jax.random.normal(
            keys[ki], (hidden_dim,), jnp.float32); ki += 1
        raw[f"beta{i}"] = 0.1 * jax.random.normal(
            keys[ki], (hidden_dim,), jnp.float32); ki += 1
        raw[f"mean{i}"] = 0.1 * jax.random.normal(
            keys[ki], (hidden_dim,), jnp.float32); ki += 1
        raw[f"var{i}"] = jnp.abs(1.0 + 0.1 * jax.random.normal(
            keys[ki], (hidden_dim,), jnp.float32)); ki += 1
    return raw


def prepare_params(raw, eps=1e-5):
    """Fold BN + bias into weights/shifts, pad hidden/class dims to 128 lanes."""
    def pad_cols(w):      # (fan_in, fan_out) -> (fan_in, 128)
        return jnp.zeros((w.shape[0], LANE), jnp.float32).at[
            :, : w.shape[1]].set(w)

    def pad_sq(w):        # (fan_in, fan_out) -> (128, 128)
        return jnp.zeros((LANE, LANE), jnp.float32).at[
            : w.shape[0], : w.shape[1]].set(w)

    def pad_v(v):
        return jnp.zeros((LANE,), jnp.float32).at[: v.shape[0]].set(v)

    ws, ts = [], []
    for i in (1, 2, 3):
        s = raw[f"gamma{i}"] / jnp.sqrt(raw[f"var{i}"] + eps)
        ws.append(raw[f"w{i}"] * s[None, :])
        ts.append((raw[f"b{i}"] - raw[f"mean{i}"]) * s + raw[f"beta{i}"])
    ws.append(raw["w4"])
    ts.append(raw["b4"])

    return {
        "w1": pad_cols(ws[0]).astype(jnp.bfloat16),                    # (in,128)
        "w234": jnp.stack([pad_sq(w) for w in ws[1:]], 0)              # (3,128,128)
                   .astype(jnp.bfloat16),
        "t": jnp.stack([pad_v(v) for v in ts], 0),                     # (4,128) f32
        "num_classes": raw["num_classes"],
    }


# ---------------------------------------------------------------------------
# Pure-JAX reference (unfolded, f32) for correctness checking
# ---------------------------------------------------------------------------
def _reference(x, raw, eps=1e-5):
    h = x
    for i in (1, 2, 3):
        h = h @ raw[f"w{i}"] + raw[f"b{i}"]
        h = (h - raw[f"mean{i}"]) / jnp.sqrt(raw[f"var{i}"] + eps)
        h = h * raw[f"gamma{i}"] + raw[f"beta{i}"]
        h = jnp.maximum(h, 0.0)
    return h @ raw["w4"] + raw["b4"]


if __name__ == "__main__":
    key = jax.random.PRNGKey(0)
    k_x, k_p = jax.random.split(key)

    batch, input_dim, hidden_dim, num_classes = 8, 32, 64, 38
    x = jax.random.normal(k_x, (batch, input_dim), jnp.float32)

    raw = init_raw_params(k_p, input_dim, hidden_dim, num_classes)
    prepped = prepare_params(raw)

    out = net3_forward(x, prepped)
    out = jax.block_until_ready(out)

    ref = _reference(x, raw)
    assert out.shape == (batch, num_classes)
    # bf16 MXU inputs + bf16 logits -> loosened tolerance vs. pure-f32 reference.
    err = float(jnp.max(jnp.abs(out.astype(jnp.float32) - ref)))
    assert jnp.allclose(out.astype(jnp.float32), ref, atol=5e-2, rtol=5e-2), err

    print("KERNEL_OK")
</pallas_src>

<mosaic_0001>
module attributes {stable_mosaic.version = 11 : i64} {
  func.func @_net3_kernel(%arg0: i32, %arg1: memref<16x32xf32, #tpu.memory_space<vmem>>, %arg2: memref<32x128xbf16, #tpu.memory_space<vmem>>, %arg3: memref<3x128x128xbf16, #tpu.memory_space<vmem>>, %arg4: memref<4x128xf32, #tpu.memory_space<vmem>>, %arg5: memref<16x128xbf16, #tpu.memory_space<vmem>>) attributes {dimension_semantics = [#tpu.dimension_semantics<parallel>], iteration_bounds = array<i64: 1>, scalar_prefetch = 0 : i64, scratch_operands = 0 : i64, tpu.core_type = #tpu.core_type<tc>, window_params = [{transform_indices = @transform_0, window_bounds = array<i64: 16, 32>}, {pipeline_mode = #tpu.pipeline_mode<synchronous>, transform_indices = @transform_1, window_bounds = array<i64: 32, 128>}, {pipeline_mode = #tpu.pipeline_mode<synchronous>, transform_indices = @transform_2, window_bounds = array<i64: 3, 128, 128>}, {pipeline_mode = #tpu.pipeline_mode<synchronous>, transform_indices = @transform_3, window_bounds = array<i64: 4, 128>}, {transform_indices = @transform_4, window_bounds = array<i64: 16, 128>}]} {
    %c0 = arith.constant 0 : index
    %c0_0 = arith.constant 0 : index
    %0 = vector.load %arg1[%c0, %c0_0] : memref<16x32xf32, #tpu.memory_space<vmem>>, vector<16x32xf32>
    %1 = arith.truncf %0 : vector<16x32xf32> to vector<16x32xbf16>
    %c0_1 = arith.constant 0 : index
    %c0_2 = arith.constant 0 : index
    %2 = vector.load %arg4[%c0_1, %c0_2] : memref<4x128xf32, #tpu.memory_space<vmem>>, vector<4x128xf32>
    %c0_3 = arith.constant 0 : index
    %c0_4 = arith.constant 0 : index
    %3 = vector.load %arg2[%c0_3, %c0_4] : memref<32x128xbf16, #tpu.memory_space<vmem>>, vector<32x128xbf16>
    %cst = arith.constant dense<0.000000e+00> : vector<16x128xf32>
    %4 = tpu.matmul %1, %3, %cst {dimension_numbers = #tpu.dot_dimension_numbers<[1], [0], [0], [1], [0, 0, 1, 1], [], []>} : vector<16x32xbf16>, vector<32x128xbf16>, vector<16x128xf32> -> vector<16x128xf32>
    %5 = vector.extract_strided_slice %2 {offsets = [0, 0], sizes = [1, 128], strides = [1, 1]} : vector<4x128xf32> to vector<1x128xf32>
    %6 = vector.broadcast %5 : vector<1x128xf32> to vector<16x128xf32>
    %7 = arith.addf %4, %6 : vector<16x128xf32>
    %cst_5 = arith.constant 0.000000e+00 : f32
    %8 = vector.broadcast %cst_5 : f32 to vector<16x128xf32>
    %9 = arith.maximumf %7, %8 : vector<16x128xf32>
    %10 = arith.truncf %9 : vector<16x128xf32> to vector<16x128xbf16>
    %c0_6 = arith.constant 0 : index
    %c0_7 = arith.constant 0 : index
    %c0_8 = arith.constant 0 : index
    %11 = vector.load %arg3[%c0_6, %c0_7, %c0_8] : memref<3x128x128xbf16, #tpu.memory_space<vmem>>, vector<1x128x128xbf16>
    %12 = vector.shape_cast %11 : vector<1x128x128xbf16> to vector<128x128xbf16>
    %cst_9 = arith.constant dense<0.000000e+00> : vector<16x128xf32>
    %13 = tpu.matmul %10, %12, %cst_9 {dimension_numbers = #tpu.dot_dimension_numbers<[1], [0], [0], [1], [0, 0, 1, 1], [], []>} : vector<16x128xbf16>, vector<128x128xbf16>, vector<16x128xf32> -> vector<16x128xf32>
    %14 = vector.extract_strided_slice %2 {offsets = [1, 0], sizes = [1, 128], strides = [1, 1]} : vector<4x128xf32> to vector<1x128xf32>
    %15 = vector.broadcast %14 : vector<1x128xf32> to vector<16x128xf32>
    %16 = arith.addf %13, %15 : vector<16x128xf32>
    %cst_10 = arith.constant 0.000000e+00 : f32
    %17 = vector.broadcast %cst_10 : f32 to vector<16x128xf32>
    %18 = arith.maximumf %16, %17 : vector<16x128xf32>
    %19 = arith.truncf %18 : vector<16x128xf32> to vector<16x128xbf16>
    %c1 = arith.constant 1 : index
    %c0_11 = arith.constant 0 : index
    %c0_12 = arith.constant 0 : index
    %20 = vector.load %arg3[%c1, %c0_11, %c0_12] : memref<3x128x128xbf16, #tpu.memory_space<vmem>>, vector<1x128x128xbf16>
    %21 = vector.shape_cast %20 : vector<1x128x128xbf16> to vector<128x128xbf16>
    %cst_13 = arith.constant dense<0.000000e+00> : vector<16x128xf32>
    %22 = tpu.matmul %19, %21, %cst_13 {dimension_numbers = #tpu.dot_dimension_numbers<[1], [0], [0], [1], [0, 0, 1, 1], [], []>} : vector<16x128xbf16>, vector<128x128xbf16>, vector<16x128xf32> -> vector<16x128xf32>
    %23 = vector.extract_strided_slice %2 {offsets = [2, 0], sizes = [1, 128], strides = [1, 1]} : vector<4x128xf32> to vector<1x128xf32>
    %24 = vector.broadcast %23 : vector<1x128xf32> to vector<16x128xf32>
    %25 = arith.addf %22, %24 : vector<16x128xf32>
    %cst_14 = arith.constant 0.000000e+00 : f32
    %26 = vector.broadcast %cst_14 : f32 to vector<16x128xf32>
    %27 = arith.maximumf %25, %26 : vector<16x128xf32>
    %28 = arith.truncf %27 : vector<16x128xf32> to vector<16x128xbf16>
    %c2 = arith.constant 2 : index
    %c0_15 = arith.constant 0 : index
    %c0_16 = arith.constant 0 : index
    %29 = vector.load %arg3[%c2, %c0_15, %c0_16] : memref<3x128x128xbf16, #tpu.memory_space<vmem>>, vector<1x128x128xbf16>
    %30 = vector.shape_cast %29 : vector<1x128x128xbf16> to vector<128x128xbf16>
    %cst_17 = arith.constant dense<0.000000e+00> : vector<16x128xf32>
    %31 = tpu.matmul %28, %30, %cst_17 {dimension_numbers = #tpu.dot_dimension_numbers<[1], [0], [0], [1], [0, 0, 1, 1], [], []>} : vector<16x128xbf16>, vector<128x128xbf16>, vector<16x128xf32> -> vector<16x128xf32>
    %32 = vector.extract_strided_slice %2 {offsets = [3, 0], sizes = [1, 128], strides = [1, 1]} : vector<4x128xf32> to vector<1x128xf32>
    %33 = vector.broadcast %32 : vector<1x128xf32> to vector<16x128xf32>
    %34 = arith.addf %31, %33 : vector<16x128xf32>
    %35 = arith.truncf %34 : vector<16x128xf32> to vector<16x128xbf16>
    %c0_18 = arith.constant 0 : index
    %c0_19 = arith.constant 0 : index
    %36 = vector.load %arg5[%c0_18, %c0_19] : memref<16x128xbf16, #tpu.memory_space<vmem>>, vector<16x128xbf16>
    tpu.vector_store %arg5[%c0_18, %c0_19], %35 {strides = array<i32>} : memref<16x128xbf16, #tpu.memory_space<vmem>>, vector<16x128xbf16>,
    return
  }
  func.func @transform_0(%arg0: i32) -> (i32, i32) {
    %c0_i32 = arith.constant 0 : i32
    %c0_i32_0 = arith.constant 0 : i32
    return %arg0, %c0_i32 : i32, i32
  }
  func.func @transform_1(%arg0: i32) -> (i32, i32) {
    %c0_i32 = arith.constant 0 : i32
    %c0_i32_0 = arith.constant 0 : i32
    %c0_i32_1 = arith.constant 0 : i32
    return %c0_i32, %c0_i32_0 : i32, i32
  }
  func.func @transform_2(%arg0: i32) -> (i32, i32, i32) {
    %c0_i32 = arith.constant 0 : i32
    %c0_i32_0 = arith.constant 0 : i32
    %c0_i32_1 = arith.constant 0 : i32
    %c0_i32_2 = arith.constant 0 : i32
    return %c0_i32, %c0_i32_0, %c0_i32_1 : i32, i32, i32
  }
  func.func @transform_3(%arg0: i32) -> (i32, i32) {
    %c0_i32 = arith.constant 0 : i32
    %c0_i32_0 = arith.constant 0 : i32
    %c0_i32_1 = arith.constant 0 : i32
    return %c0_i32, %c0_i32_0 : i32, i32
  }
  func.func @transform_4(%arg0: i32) -> (i32, i32) {
    %c0_i32 = arith.constant 0 : i32
    %c0_i32_0 = arith.constant 0 : i32
    return %arg0, %c0_i32 : i32, i32
  }
}

</mosaic_0001>

<llo_original>
// kernel: _net3_forward.1
$region0: #{_net3_forward.1}
  #allocation0 [shape = 'u32[]', space=smem, size = 0x4, offset = 0x4, fixed_abs, tag = 'smem constant byte address 0x4 - core index']
  #allocation1 [shape = 'u32[144,128]{1,0:T(1,128)}', space=vmem, size = 0x12000, scoped, tag = 'internal scratch']
  %s0 = inlined_call_operand.vmem [shape: f32[16,32], index: 0, kind: input, shape index: {}]
  %s1 = inlined_call_operand.vmem [shape: bf16[32,128], index: 1, kind: input, shape index: {}]
  %s2 = inlined_call_operand.hbm [shape: bf16[3,128,128], index: 2, kind: input, shape index: {}]
  %s3 = inlined_call_operand.vmem [shape: f32[4,128], index: 3, kind: input, shape index: {}]
  %s4 = inlined_call_operand.vmem [shape: bf16[16,128], index: 4, kind: output, shape index: {}]
  %s5 = sld [smem:[#allocation0]]
  $region30: #{_net3_forward.1} parent=0
    _
  %s7 = ssub.s32 1, %s5
  %s8 = scalar_select 0, %s7, %s5
  $region1: #{_net3_forward.1} parent=0
    #allocation2 [shape = 'u8[98304]{0}', space=vmem, size = 0x18000, scoped, tag = 'input window, operand 2, single buffered']
    #allocation3 [shape = 's32[1]{0}', space=sflag, size = 0x4, scoped, tag = 'scoped memory for _net3_forward.1']
    %9 = vsyncpa [#allocation3], 0
    // Predicated region
    $region2: #{_net3_forward.1} parent=1 // pred_check
      _
    $region3: #{_net3_forward.1} parent=1 // pred_check_branch
      %11 = sbr.rel (0) target = $region5
    $region4: #{_net3_forward.1} parent=1 // pred_region
      _
    $region5: #{_net3_forward.1} parent=1 // pred_fallthru
      _
    // Predicated region
    $region6: #{_net3_forward.1} parent=1 // pred_check
      _
    $region7: #{_net3_forward.1} parent=1 // pred_check_branch
      %13 = sbr.rel (0) target = $region9
    $region8: #{_net3_forward.1} parent=1 // pred_region
      _
    $region9: #{_net3_forward.1} parent=1 // pred_fallthru
      _
    // Predicated region
    $region10: #{_net3_forward.1} parent=1 // pred_check
      _
    $region11: #{_net3_forward.1} parent=1 // pred_check_branch
      %15 = sbr.rel (0) target = $region13
    $region12: #{_net3_forward.1} parent=1 // pred_region
      %s17 = ssub.s32 3072, 3072
      %18 = vsyncadd [#allocation3], %s17
      %s19 = sshll.u32 [#allocation2], 4
      %s20 = int_to_ptr.vmem [resolvable:$true] %s19
      %25 = dma.hbm_to_vmem [thread:$0]  %s2, 3072, %s20, [#allocation3], 64, 64, 4
    $region13: #{_net3_forward.1} parent=1 // pred_fallthru
      _
    // Predicated region
    $region14: #{_net3_forward.1} parent=1 // pred_check
      _
    $region15: #{_net3_forward.1} parent=1 // pred_check_branch
      %27 = sbr.rel (0) target = $region17
    $region16: #{_net3_forward.1} parent=1 // pred_region
      _
    $region17: #{_net3_forward.1} parent=1 // pred_fallthru
      _
    // Predicated region
    $region18: #{_net3_forward.1} parent=1 // pred_check
      _
    $region19: #{_net3_forward.1} parent=1 // pred_check_branch
      %29 = sbr.rel (0) target = $region21
    $region20: #{_net3_forward.1} parent=1 // pred_region
      %30 = dma.done [#allocation3], 3072
    $region21: #{_net3_forward.1} parent=1 // pred_fallthru
      _
    %v32 = vld [vmem:[%s0] sm:$0xff]
    %v33 = vld [vmem:[%s0 + $0x8] sm:$0xff]
    %v34 = vpack.c.bf16 %v33, %v32
    %v35 = vld [vmem:[%s3] sm:$0xf]
    %v36 = vld [vmem:[%s1] sm:$0xf]
    %v37 = vld [vmem:[%s1 + $0x4] sm:$0xf]
    %v38 = vld [vmem:[%s1 + $0x8] sm:$0xf]
    %v39 = vld [vmem:[%s1 + $0xc] sm:$0xf]
    %v40 = vlaneseq
    %v41 = vshrl.u32 %v40, 7
    %v42 = vsub.s32 0, %v41
    %v43 = vrot.slane %v35, %v42
    %v48 = vunpack.c.l.b16 %v36
    %v49 = vunpack.c.l.b16 %v37
    %v50 = vunpack.c.l.b16 %v38
    %v51 = vunpack.c.l.b16 %v39
    %v52 = vpack.c.b16 %v49, %v48
    %v53 = vpack.c.b16 %v51, %v50
    %vm56 = vcmask 261120
    %v58 = vsel %vm56, %v34, 0
    %60 = vmatprep.subr.bf16.mxu0 0
    %61 = vmatpush1.bf16.msra.mxu0 0
    %62 = vmatprep.subr.bf16.mxu0 0
    %63 = vmatpush1.bf16.msra.mxu0 0
    %64 = vmatprep.subr.bf16.mxu0 0
    %65 = vmatpush1.bf16.msra.mxu0 0
    %66 = vmatprep.subr.bf16.mxu0 0
    %67 = vmatpush1.bf16.msra.mxu0 0
    %68 = vmatprep.subr.bf16.mxu0 0
    %69 = vmatpush1.bf16.msra.mxu0 0
    %70 = vmatprep.subr.bf16.mxu0 0
    %71 = vmatpush1.bf16.msra.mxu0 0
    %72 = vmatprep.subr.bf16.mxu0 0
    %73 = vmatpush1.bf16.msra.mxu0 %v53
    %74 = vmatprep.subr.bf16.mxu0 0
    %75 = vmatpush1.bf16.msra.mxu0 %v52
    %76 = vmatprep.subr.bf16.mxu0 0
    %77 = vmatpush2.bf16.msra.mxu0 0
    %78 = vmatprep.subr.bf16.mxu0 0
    %79 = vmatpush2.bf16.msra.mxu0 0
    %80 = vmatprep.subr.bf16.mxu0 0
    %81 = vmatpush2.bf16.msra.mxu0 0
    %82 = vmatprep.subr.bf16.mxu0 0
    %83 = vmatpush2.bf16.msra.mxu0 0
    %84 = vmatprep.subr.bf16.mxu0 0
    %85 = vmatpush2.bf16.msra.mxu0 0
    %86 = vmatprep.subr.bf16.mxu0 0
    %87 = vmatpush2.bf16.msra.mxu0 0
    %88 = vmatprep.subr.bf16.mxu0 0
    %89 = vmatpush2.bf16.msra.mxu0 0
    %90 = vmatprep.subr.bf16.mxu0 0
    %91 = vmatpush2.bf16.msra.mxu0 0
    %92 = vmatprep.mubr.bf16.mxu0 0
    %93 = vmatmul.mubr.bf16.gmra.mxu0 %v58
    %v94 = vpop.f32.mrf.mxu0
    %v95 = vadd.f32 %v43, %v94
    %v96 = vpop.f32.mrf.mxu0
    %v97 = vpop.f32.mrf.mxu0
    %v98 = vadd.f32 %v43, %v97
    %v99 = vpop.f32.mrf.mxu0
    %100 = vdwg.mxu0
    %v101 = vmax.f32 %v95, 0.0
    %v102 = vmax.f32 %v98, 0.0
    %v103 = vpack.c.bf16 %v102, %v101
    %v104 = vld [vmem:[#allocation2] sm:$0xf]
    %v105 = vld [vmem:[#allocation2 + $0x4] sm:$0xf]
    %v106 = vld [vmem:[#allocation2 + $0x8] sm:$0xf]
    %v107 = vld [vmem:[#allocation2 + $0xc] sm:$0xf]
    %v108 = vld [vmem:[#allocation2 + $0x10] sm:$0xf]
    %v109 = vld [vmem:[#allocation2 + $0x14] sm:$0xf]
    %v110 = vld [vmem:[#allocation2 + $0x18] sm:$0xf]
    %v111 = vld [vmem:[#allocation2 + $0x1c] sm:$0xf]
    %v112 = vld [vmem:[#allocation2 + $0x20] sm:$0xf]
    %v113 = vld [vmem:[#allocation2 + $0x24] sm:$0xf]
    %v114 = vld [vmem:[#allocation2 + $0x28] sm:$0xf]
    %v115 = vld [vmem:[#allocation2 + $0x2c] sm:$0xf]
    %v116 = vld [vmem:[#allocation2 + $0x30] sm:$0xf]
    %v117 = vld [vmem:[#allocation2 + $0x34] sm:$0xf]
    %v118 = vld [vmem:[#allocation2 + $0x38] sm:$0xf]
    %v119 = vld [vmem:[#allocation2 + $0x3c] sm:$0xf]
    %v120 = vlaneseq
    %v121 = vshrl.u32 %v120, 7
    %v122 = vsub.s32 1, %v121
    %v123 = vrot.slane %v35, %v122
    %v140 = vunpack.c.l.b16 %v104
    %v141 = vunpack.c.l.b16 %v105
    %v142 = vunpack.c.l.b16 %v106
    %v143 = vunpack.c.l.b16 %v107
    %v144 = vunpack.c.l.b16 %v108
    %v145 = vunpack.c.l.b16 %v109
    %v146 = vunpack.c.l.b16 %v110
    %v147 = vunpack.c.l.b16 %v111
    %v148 = vunpack.c.l.b16 %v112
    %v149 = vunpack.c.l.b16 %v113
    %v150 = vunpack.c.l.b16 %v114
    %v151 = vunpack.c.l.b16 %v115
    %v152 = vunpack.c.l.b16 %v116
    %v153 = vunpack.c.l.b16 %v117
    %v154 = vunpack.c.l.b16 %v118
    %v155 = vunpack.c.l.b16 %v119
    %v156 = vpack.c.b16 %v141, %v140
    %v157 = vpack.c.b16 %v143, %v142
    %v158 = vpack.c.b16 %v145, %v144
    %v159 = vpack.c.b16 %v147, %v146
    %v160 = vpack.c.b16 %v149, %v148
    %v161 = vpack.c.b16 %v151, %v150
    %v162 = vpack.c.b16 %v153, %v152
    %v163 = vpack.c.b16 %v155, %v154
    %172 = vmatprep.subr.bf16.mxu0 0
    %173 = vmatpush1.bf16.msra.mxu0 %v163
    %174 = vmatprep.subr.bf16.mxu0 0
    %175 = vmatpush1.bf16.msra.mxu0 %v162
    %176 = vmatprep.subr.bf16.mxu0 0
    %177 = vmatpush1.bf16.msra.mxu0 %v161
    %178 = vmatprep.subr.bf16.mxu0 0
    %179 = vmatpush1.bf16.msra.mxu0 %v160
    %180 = vmatprep.subr.bf16.mxu0 0
    %181 = vmatpush1.bf16.msra.mxu0 %v159
    %182 = vmatprep.subr.bf16.mxu0 0
    %183 = vmatpush1.bf16.msra.mxu0 %v158
    %184 = vmatprep.subr.bf16.mxu0 0
    %185 = vmatpush1.bf16.msra.mxu0 %v157
    %186 = vmatprep.subr.bf16.mxu0 0
    %187 = vmatpush1.bf16.msra.mxu0 %v156
    %188 = vmatprep.subr.bf16.mxu0 0
    %189 = vmatpush2.bf16.msra.mxu0 0
    %190 = vmatprep.subr.bf16.mxu0 0
    %191 = vmatpush2.bf16.msra.mxu0 0
    %192 = vmatprep.subr.bf16.mxu0 0
    %193 = vmatpush2.bf16.msra.mxu0 0
    %194 = vmatprep.subr.bf16.mxu0 0
    %195 = vmatpush2.bf16.msra.mxu0 0
    %196 = vmatprep.subr.bf16.mxu0 0
    %197 = vmatpush2.bf16.msra.mxu0 0
    %198 = vmatprep.subr.bf16.mxu0 0
    %199 = vmatpush2.bf16.msra.mxu0 0
    %200 = vmatprep.subr.bf16.mxu0 0
    %201 = vmatpush2.bf16.msra.mxu0 0
    %202 = vmatprep.subr.bf16.mxu0 0
    %203 = vmatpush2.bf16.msra.mxu0 0
    %204 = vmatprep.mubr.bf16.mxu0 0
    %205 = vmatmul.mubr.bf16.gmra.mxu0 %v103
    %v206 = vpop.f32.mrf.mxu0
    %v207 = vadd.f32 %v123, %v206
    %v208 = vpop.f32.mrf.mxu0
    %v209 = vpop.f32.mrf.mxu0
    %v210 = vadd.f32 %v123, %v209
    %v211 = vpop.f32.mrf.mxu0
    %212 = vdwg.mxu0
    %v213 = vmax.f32 %v207, 0.0
    %v214 = vmax.f32 %v210, 0.0
    %v215 = vpack.c.bf16 %v214, %v213
    %s216 = scalar_lea.vmem [#allocation2], 64
    %v217 = vld [vmem:[%s216] sm:$0xf]
    %v218 = vld [vmem:[%s216 + $0x4] sm:$0xf]
    %v219 = vld [vmem:[%s216 + $0x8] sm:$0xf]
    %v220 = vld [vmem:[%s216 + $0xc] sm:$0xf]
    %v221 = vld [vmem:[%s216 + $0x10] sm:$0xf]
    %v222 = vld [vmem:[%s216 + $0x14] sm:$0xf]
    %v223 = vld [vmem:[%s216 + $0x18] sm:$0xf]
    %v224 = vld [vmem:[%s216 + $0x1c] sm:$0xf]
    %v225 = vld [vmem:[%s216 + $0x20] sm:$0xf]
    %v226 = vld [vmem:[%s216 + $0x24] sm:$0xf]
    %v227 = vld [vmem:[%s216 + $0x28] sm:$0xf]
    %v228 = vld [vmem:[%s216 + $0x2c] sm:$0xf]
    %v229 = vld [vmem:[%s216 + $0x30] sm:$0xf]
    %v230 = vld [vmem:[%s216 + $0x34] sm:$0xf]
    %v231 = vld [vmem:[%s216 + $0x38] sm:$0xf]
    %v232 = vld [vmem:[%s216 + $0x3c] sm:$0xf]
    %v233 = vlaneseq
    %v234 = vshrl.u32 %v233, 7
    %v235 = vsub.s32 2, %v234
    %v236 = vrot.slane %v35, %v235
    %v253 = vunpack.c.l.b16 %v217
    %v254 = vunpack.c.l.b16 %v218
    %v255 = vunpack.c.l.b16 %v219
    %v256 = vunpack.c.l.b16 %v220
    %v257 = vunpack.c.l.b16 %v221
    %v258 = vunpack.c.l.b16 %v222
    %v259 = vunpack.c.l.b16 %v223
    %v260 = vunpack.c.l.b16 %v224
    %v261 = vunpack.c.l.b16 %v225
    %v262 = vunpack.c.l.b16 %v226
    %v263 = vunpack.c.l.b16 %v227
    %v264 = vunpack.c.l.b16 %v228
    %v265 = vunpack.c.l.b16 %v229
    %v266 = vunpack.c.l.b16 %v230
    %v267 = vunpack.c.l.b16 %v231
    %v268 = vunpack.c.l.b16 %v232
    %v269 = vpack.c.b16 %v254, %v253
    %v270 = vpack.c.b16 %v256, %v255
    %v271 = vpack.c.b16 %v258, %v257
    %v272 = vpack.c.b16 %v260, %v259
    %v273 = vpack.c.b16 %v262, %v261
    %v274 = vpack.c.b16 %v264, %v263
    %v275 = vpack.c.b16 %v266, %v265
    %v276 = vpack.c.b16 %v268, %v267
    %285 = vmatprep.subr.bf16.mxu0 0
    %286 = vmatpush1.bf16.msra.mxu0 %v276
    %287 = vmatprep.subr.bf16.mxu0 0
    %288 = vmatpush1.bf16.msra.mxu0 %v275
    %289 = vmatprep.subr.bf16.mxu0 0
    %290 = vmatpush1.bf16.msra.mxu0 %v274
    %291 = vmatprep.subr.bf16.mxu0 0
    %292 = vmatpush1.bf16.msra.mxu0 %v273
    %293 = vmatprep.subr.bf16.mxu0 0
    %294 = vmatpush1.bf16.msra.mxu0 %v272
    %295 = vmatprep.subr.bf16.mxu0 0
    %296 = vmatpush1.bf16.msra.mxu0 %v271
    %297 = vmatprep.subr.bf16.mxu0 0
    %298 = vmatpush1.bf16.msra.mxu0 %v270
    %299 = vmatprep.subr.bf16.mxu0 0
    %300 = vmatpush1.bf16.msra.mxu0 %v269
    %301 = vmatprep.subr.bf16.mxu0 0
    %302 = vmatpush2.bf16.msra.mxu0 0
    %303 = vmatprep.subr.bf16.mxu0 0
    %304 = vmatpush2.bf16.msra.mxu0 0
    %305 = vmatprep.subr.bf16.mxu0 0
    %306 = vmatpush2.bf16.msra.mxu0 0
    %307 = vmatprep.subr.bf16.mxu0 0
    %308 = vmatpush2.bf16.msra.mxu0 0
    %309 = vmatprep.subr.bf16.mxu0 0
    %310 = vmatpush2.bf16.msra.mxu0 0
    %311 = vmatprep.subr.bf16.mxu0 0
    %312 = vmatpush2.bf16.msra.mxu0 0
    %313 = vmatprep.subr.bf16.mxu0 0
    %314 = vmatpush2.bf16.msra.mxu0 0
    %315 = vmatprep.subr.bf16.mxu0 0
    %316 = vmatpush2.bf16.msra.mxu0 0
    %317 = vmatprep.mubr.bf16.mxu0 0
    %318 = vmatmul.mubr.bf16.gmra.mxu0 %v215
    %v319 = vpop.f32.mrf.mxu0
    %v320 = vadd.f32 %v236, %v319
    %v321 = vpop.f32.mrf.mxu0
    %v322 = vpop.f32.mrf.mxu0
    %v323 = vadd.f32 %v236, %v322
    %v324 = vpop.f32.mrf.mxu0
    %325 = vdwg.mxu0
    %v326 = vmax.f32 %v320, 0.0
    %v327 = vmax.f32 %v323, 0.0
    %v328 = vpack.c.bf16 %v327, %v326
    %s329 = scalar_lea.vmem [#allocation2], 128
    %v330 = vld [vmem:[%s329] sm:$0xf]
    %v331 = vld [vmem:[%s329 + $0x4] sm:$0xf]
    %v332 = vld [vmem:[%s329 + $0x8] sm:$0xf]
    %v333 = vld [vmem:[%s329 + $0xc] sm:$0xf]
    %v334 = vld [vmem:[%s329 + $0x10] sm:$0xf]
    %v335 = vld [vmem:[%s329 + $0x14] sm:$0xf]
    %v336 = vld [vmem:[%s329 + $0x18] sm:$0xf]
    %v337 = vld [vmem:[%s329 + $0x1c] sm:$0xf]
    %v338 = vld [vmem:[%s329 + $0x20] sm:$0xf]
    %v339 = vld [vmem:[%s329 + $0x24] sm:$0xf]
    %v340 = vld [vmem:[%s329 + $0x28] sm:$0xf]
    %v341 = vld [vmem:[%s329 + $0x2c] sm:$0xf]
    %v342 = vld [vmem:[%s329 + $0x30] sm:$0xf]
    %v343 = vld [vmem:[%s329 + $0x34] sm:$0xf]
    %v344 = vld [vmem:[%s329 + $0x38] sm:$0xf]
    %v345 = vld [vmem:[%s329 + $0x3c] sm:$0xf]
    %v346 = vlaneseq
    %v347 = vshrl.u32 %v346, 7
    %v348 = vsub.s32 3, %v347
    %v349 = vrot.slane %v35, %v348
    %v366 = vunpack.c.l.b16 %v330
    %v367 = vunpack.c.l.b16 %v331
    %v368 = vunpack.c.l.b16 %v332
    %v369 = vunpack.c.l.b16 %v333
    %v370 = vunpack.c.l.b16 %v334
    %v371 = vunpack.c.l.b16 %v335
    %v372 = vunpack.c.l.b16 %v336
    %v373 = vunpack.c.l.b16 %v337
    %v374 = vunpack.c.l.b16 %v338
    %v375 = vunpack.c.l.b16 %v339
    %v376 = vunpack.c.l.b16 %v340
    %v377 = vunpack.c.l.b16 %v341
    %v378 = vunpack.c.l.b16 %v342
    %v379 = vunpack.c.l.b16 %v343
    %v380 = vunpack.c.l.b16 %v344
    %v381 = vunpack.c.l.b16 %v345
    %v382 = vpack.c.b16 %v367, %v366
    %v383 = vpack.c.b16 %v369, %v368
    %v384 = vpack.c.b16 %v371, %v370
    %v385 = vpack.c.b16 %v373, %v372
    %v386 = vpack.c.b16 %v375, %v374
    %v387 = vpack.c.b16 %v377, %v376
    %v388 = vpack.c.b16 %v379, %v378
    %v389 = vpack.c.b16 %v381, %v380
    %398 = vmatprep.subr.bf16.mxu0 0
    %399 = vmatpush1.bf16.msra.mxu0 %v389
    %400 = vmatprep.subr.bf16.mxu0 0
    %401 = vmatpush1.bf16.msra.mxu0 %v388
    %402 = vmatprep.subr.bf16.mxu0 0
    %403 = vmatpush1.bf16.msra.mxu0 %v387
    %404 = vmatprep.subr.bf16.mxu0 0
    %405 = vmatpush1.bf16.msra.mxu0 %v386
    %406 = vmatprep.subr.bf16.mxu0 0
    %407 = vmatpush1.bf16.msra.mxu0 %v385
    %408 = vmatprep.subr.bf16.mxu0 0
    %409 = vmatpush1.bf16.msra.mxu0 %v384
    %410 = vmatprep.subr.bf16.mxu0 0
    %411 = vmatpush1.bf16.msra.mxu0 %v383
    %412 = vmatprep.subr.bf16.mxu0 0
    %413 = vmatpush1.bf16.msra.mxu0 %v382
    %414 = vmatprep.subr.bf16.mxu0 0
    %415 = vmatpush2.bf16.msra.mxu0 0
    %416 = vmatprep.subr.bf16.mxu0 0
    %417 = vmatpush2.bf16.msra.mxu0 0
    %418 = vmatprep.subr.bf16.mxu0 0
    %419 = vmatpush2.bf16.msra.mxu0 0
    %420 = vmatprep.subr.bf16.mxu0 0
    %421 = vmatpush2.bf16.msra.mxu0 0
    %422 = vmatprep.subr.bf16.mxu0 0
    %423 = vmatpush2.bf16.msra.mxu0 0
    %424 = vmatprep.subr.bf16.mxu0 0
    %425 = vmatpush2.bf16.msra.mxu0 0
    %426 = vmatprep.subr.bf16.mxu0 0
    %427 = vmatpush2.bf16.msra.mxu0 0
    %428 = vmatprep.subr.bf16.mxu0 0
    %429 = vmatpush2.bf16.msra.mxu0 0
    %430 = vmatprep.mubr.bf16.mxu0 0
    %431 = vmatmul.mubr.bf16.gmra.mxu0 %v328
    %v432 = vpop.f32.mrf.mxu0
    %v433 = vadd.f32 %v349, %v432
    %v434 = vpop.f32.mrf.mxu0
    %v435 = vpop.f32.mrf.mxu0
    %v436 = vadd.f32 %v349, %v435
    %v437 = vpop.f32.mrf.mxu0
    %438 = vdwg.mxu0
    %v439 = vpack.c.bf16 %v436, %v433
    %v441 = vunpack.c.l.b16 %v439
    %v442 = vunpack.c.h.b16 %v439
    %v443 = vpack.c.b16 %v441, %v441
    %v444 = vpack.c.b16 %v442, %v442
    %447 = vst [vmem:[%s4] sm:$0xf] %v443
    %448 = vst [vmem:[%s4 + $0x4] sm:$0xf] %v444
    // Predicated region
    $region22: #{_net3_forward.1} parent=1 // pred_check
      _
    $region23: #{_net3_forward.1} parent=1 // pred_check_branch
      %450 = sbr.rel (0) target = $region25
    $region24: #{_net3_forward.1} parent=1 // pred_region
      _
    $region25: #{_net3_forward.1} parent=1 // pred_fallthru
      _
    // Predicated region
    $region26: #{_net3_forward.1} parent=1 // pred_check
      _
    $region27: #{_net3_forward.1} parent=1 // pred_check_branch
      %452 = sbr.rel (0) target = $region29
    $region28: #{_net3_forward.1} parent=1 // pred_region
      _
    $region29: #{_net3_forward.1} parent=1 // pred_fallthru
      _
    %453 = vsyncpa [#allocation3], 1

</llo_original>
